<compile_context>
chip_gen: v6e
topology: v6e:2x2x1
jax: 0.10.0
libtpu: 0.0.40
codegen_flags: <defaults>
</compile_context>

<pallas_src>
import functools
import numpy as np
import jax
import jax.numpy as jnp
from jax.experimental import pallas as pl
from jax.experimental.pallas import tpu as pltpu


# ----------------------------- helpers ------------------------------

def _round_up(x, m):
    return (x + m - 1) // m * m


def _row_tile(M, target=256):
    # Big problems: 256-row tiles (close to HBM roofline per the tiling measurements).
    # Small problems: 8-row tiles so the grid / pipeline is still exercised.
    return target if M >= target else 8


_VMEM_LIMIT = 48 * 1024 * 1024  # explicit scoped-VMEM budget, safe on v5e/v6e/v7x


# ----------------------------- Pallas kernels ------------------------------

def _matmul_bias_act_kernel(x_ref, w_ref, b_ref, o_ref, *, gelu):
    # x_ref: (tm, Kp) bf16, w_ref: (Kp, C) bf16, b_ref: (1, C) f32 -> o_ref: (tm, C) f32
    acc = jnp.dot(x_ref[...], w_ref[...], preferred_element_type=jnp.float32)
    acc = acc + b_ref[...]
    if gelu:
        acc = jax.nn.gelu(acc, approximate=True)
    o_ref[...] = acc


def _cosine_logits_kernel(c_ref, t_ref, m_ref, o_ref, *, inv_temp):
    # c_ref: (tm, C)  f32   -- one context vector per row (no K1x broadcast)
    # t_ref: (tm, K1, C) f32 -- k==0 is the positive z, k>=1 are negatives
    # m_ref: (tm, K1) int32 -- 1 where a sampled negative equals the positive position
    # o_ref: (tm, K1) f32   -- lane-dense logits
    c = c_ref[...]
    t = t_ref[...]
    dots = jnp.sum(c[:, None, :] * t, axis=-1)              # (tm, K1)
    cn2 = jnp.sum(c * c, axis=-1, keepdims=True)            # (tm, 1)
    tn2 = jnp.sum(t * t, axis=-1)                            # (tm, K1)
    eps2 = jnp.float32(1e-16)                                # == (1e-8)^2 on the norms
    inv = jax.lax.rsqrt(jnp.maximum(cn2, eps2) * jnp.maximum(tn2, eps2))
    logits = dots * inv * jnp.float32(inv_temp)
    o_ref[...] = jnp.where(m_ref[...] > 0, -jnp.inf, logits)


# ----------------------------- Pallas wrappers ------------------------------

def tiled_matmul_bias_act(x, w, b, *, gelu):
    """f32 in -> bf16 MXU matmul (f32 accumulate) + bias (+ GELU), row-tiled."""
    M, K = x.shape
    Kw, Cout = w.shape
    assert K == Kw
    Kp = _round_up(K, 128)                   # lane-align the contraction dim
    tm = _row_tile(M)
    Mp = _round_up(M, tm)

    x_p = jnp.pad(x, ((0, Mp - M), (0, Kp - K))).astype(jnp.bfloat16)
    w_p = jnp.pad(w, ((0, Kp - K), (0, 0))).astype(jnp.bfloat16)
    b_p = b.reshape(1, Cout).astype(jnp.float32)

    cost = pl.CostEstimate(
        flops=2 * Mp * Kp * Cout,
        transcendentals=(Mp * Cout) if gelu else 0,
        bytes_accessed=x_p.size * 2 + w_p.size * 2 + b_p.size * 4 + Mp * Cout * 4,
    )
    out = pl.pallas_call(
        functools.partial(_matmul_bias_act_kernel, gelu=gelu),
        out_shape=jax.ShapeDtypeStruct((Mp, Cout), jnp.float32),
        grid=(Mp // tm,),
        in_specs=[
            pl.BlockSpec((tm, Kp), lambda i: (i, 0)),
            pl.BlockSpec((Kp, Cout), lambda i: (0, 0)),   # weight resident across grid
            pl.BlockSpec((1, Cout), lambda i: (0, 0)),
        ],
        out_specs=pl.BlockSpec((tm, Cout), lambda i: (i, 0)),
        compiler_params=pltpu.CompilerParams(
            dimension_semantics=("parallel",),
            vmem_limit_bytes=_VMEM_LIMIT,
        ),
        cost_estimate=cost,
    )(x_p, w_p, b_p)
    return out[:M]


def cosine_logits(c_flat, t_flat, neg_is_pos, temp):
    """Cosine-similarity logits, row-tiled, lane-dense (M, K1) output."""
    M, C = c_flat.shape
    _, K1, _ = t_flat.shape

    # Size the row tile so double-buffered f32 blocks stay well under ~24 MiB
    # (v7x has 64 MiB physical / 32 MiB default scoped VMEM).
    per_row_bytes = (K1 * C + C + 2 * K1) * 4
    tm = max(8, min(256, (12 * 1024 * 1024 // (2 * per_row_bytes)) // 8 * 8))
    if M < tm:
        tm = 8
    Mp = _round_up(M, tm)

    c_p = jnp.pad(c_flat.astype(jnp.float32), ((0, Mp - M), (0, 0)))
    t_p = jnp.pad(t_flat.astype(jnp.float32), ((0, Mp - M), (0, 0), (0, 0)))
    m_p = jnp.pad(neg_is_pos.astype(jnp.int32), ((0, Mp - M), (0, 0)))

    cost = pl.CostEstimate(
        flops=4 * Mp * K1 * C,
        transcendentals=Mp * K1,
        bytes_accessed=c_p.size * 4 + t_p.size * 4 + m_p.size * 4 + Mp * K1 * 4,
    )
    out = pl.pallas_call(
        functools.partial(_cosine_logits_kernel, inv_temp=1.0 / float(temp)),
        out_shape=jax.ShapeDtypeStruct((Mp, K1), jnp.float32),
        grid=(Mp // tm,),
        in_specs=[
            pl.BlockSpec((tm, C), lambda i: (i, 0)),
            pl.BlockSpec((tm, K1, C), lambda i: (i, 0, 0)),
            pl.BlockSpec((tm, K1), lambda i: (i, 0)),
        ],
        out_specs=pl.BlockSpec((tm, K1), lambda i: (i, 0)),
        compiler_params=pltpu.CompilerParams(
            dimension_semantics=("parallel",),
            vmem_limit_bytes=_VMEM_LIMIT,
        ),
        cost_estimate=cost,
    )(c_p, t_p, m_p)
    return out[:M]


# ----------------------------- mask helpers (glue) ------------------------------

def _make_span_from_seeds(seeds, span, total=None):
    inds = []
    for seed in seeds:
        for i in range(seed, seed + span):
            if total is not None and i >= total:
                break
            if i not in inds:
                inds.append(i)
    return np.array(inds)


def make_eval_mask(shape, mask_rate, mask_span):
    N, L = shape
    mask = np.zeros((N, L), dtype=bool)
    half_avg_num_seeds = max(1, int(L * mask_rate * 0.5))
    if L <= mask_span * half_avg_num_seeds:
        raise ValueError("Masking the entire span, pointless.")
    seeds = (L // half_avg_num_seeds) * np.arange(half_avg_num_seeds).astype(int)
    mask_indices = _make_span_from_seeds(seeds, mask_span)
    mask[:, mask_indices] = True
    return jnp.asarray(mask)


# ----------------------------- ContrastiveSSL (Pallas) ------------------------------

class ContrastiveSSLPallas:
    """Pallas re-implementation of ContrastiveSSL.forward (eval-mode mask).

    convencoder := Conv1d(C_in -> C, ks=3, stride=2, pad=1) + GELU   (synthetic)
    transformer := mask-token substitution, start-token prepend, linear C->C (synthetic)

    Activations are kept channel-last (N, L, C) internally; the returned tensors keep
    the PyTorch (N, C, L) / (N, C, L+1) layout.
    """

    def __init__(self, in_channels, hidden, mask_rate=0.1, mask_span=6, temp=0.5,
                 num_negatives=100, key=None):
        self.C_in = in_channels
        self.C = hidden
        self.ks = 3
        self.stride = 2
        self.pad = 1
        self.mask_rate = mask_rate
        self.mask_span = mask_span
        self.temp = temp
        self.num_negatives = num_negatives

        k1, k2, k3, k4, k5, k6 = jax.random.split(key, 6)
        # Deterministic synthetic parameters (torch Conv1d weight layout (C_out, C_in, ks)).
        conv_w = 0.1 * jax.random.normal(k1, (hidden, in_channels, self.ks), jnp.float32)
        self.conv_w_mat = conv_w.transpose(1, 2, 0).reshape(in_channels * self.ks, hidden)
        self.conv_b = 0.1 * jax.random.normal(k2, (hidden,), jnp.float32)
        self.trans_w = 0.1 * jax.random.normal(k3, (hidden, hidden), jnp.float32)
        self.trans_b = 0.1 * jax.random.normal(k4, (hidden,), jnp.float32)
        self.start_token = 0.1 * jax.random.normal(k5, (hidden,), jnp.float32)
        self.mask_token = 0.1 * jax.random.normal(k6, (hidden,), jnp.float32)

    # --- convencoder: Conv1d via im2col + row-tiled Pallas matmul+bias+GELU ---
    def convencode(self, x):
        N, Cin, T = x.shape
        xp = jnp.pad(x, ((0, 0), (0, 0), (self.pad, self.pad)))
        L = (T + 2 * self.pad - self.ks) // self.stride + 1
        idx = self.stride * jnp.arange(L)[:, None] + jnp.arange(self.ks)[None, :]  # (L, ks)
        windows = xp[:, :, idx]                                 # (N, Cin, L, ks)
        cols = windows.transpose(0, 2, 1, 3).reshape(N * L, Cin * self.ks)
        out = tiled_matmul_bias_act(cols, self.conv_w_mat, self.conv_b, gelu=True)
        return out.reshape(N, L, self.C)                        # channel-last (N, L, C)

    # --- transformer stand-in: mask tokens, prepend start token, linear (Pallas matmul) ---
    def transform(self, z_nlc, mask):
        N, L, C = z_nlc.shape
        zt = jnp.where(mask[..., None], self.mask_token[None, None, :], z_nlc)
        start = jnp.broadcast_to(self.start_token[None, None, :], (N, 1, C))
        seq = jnp.concatenate([start, zt], axis=1)              # (N, L+1, C)
        flat = seq.reshape(N * (L + 1), C)
        out = tiled_matmul_bias_act(flat, self.trans_w, self.trans_b, gelu=False)
        return out.reshape(N, L + 1, C)                         # channel-last (N, L+1, C)

    # --- negative sampling: uniform without replacement over positions != l (glue) ---
    # TODO(synk): at large K the (N,L,K,C) negatives slab could be avoided entirely by
    # scalar-prefetching neg_inds and DMA-gathering rows of z inside the cosine kernel.
    def sample_negatives(self, z_nlc, key):
        N, L, C = z_nlc.shape
        K = self.num_negatives
        g = jax.random.uniform(key, (N, L, L))
        eye = jnp.eye(L, dtype=bool)
        g = jnp.where(eye[None, :, :], -jnp.inf, g)
        neg_inds = jnp.argsort(-g, axis=-1)[..., :K]            # (N, L, K), distinct, != l
        offs = (jnp.arange(N) * L)[:, None, None]
        flat_inds = (neg_inds + offs).reshape(-1)
        z_k = z_nlc.reshape(N * L, C)
        negatives = z_k[flat_inds].reshape(N, L, K, C)
        return negatives, neg_inds

    # --- cosine-similarity logits (row-tiled Pallas kernel, lane-dense output) ---
    def compute_logits(self, z_nlc, c_nlc, negatives, neg_inds):
        N, L, C = z_nlc.shape
        K = self.num_negatives
        K1 = K + 1
        c_seq = c_nlc[:, 1:, :]                                   # (N, L, C) drop start token
        targets = jnp.concatenate([z_nlc[:, :, None, :], negatives], axis=2)  # (N, L, K1, C)
        # negative-in-target mask via integer index comparison (k==0 column is never masked).
        is_pos = neg_inds == jnp.arange(L)[None, :, None]          # (N, L, K)
        neg_is_pos = jnp.concatenate(
            [jnp.zeros((N, L, 1), dtype=bool), is_pos], axis=2)    # (N, L, K1)
        M = N * L
        return cosine_logits(c_seq.reshape(M, C),
                             targets.reshape(M, K1, C),
                             neg_is_pos.reshape(M, K1),
                             self.temp)                            # (N*L, K1)

    # --- forward (eval mode: deterministic evenly-spaced mask) ---
    def forward(self, x, neg_key):
        z_nlc = self.convencode(x)                                # (N, L, C)
        N, L, C = z_nlc.shape
        mask = make_eval_mask((N, L), self.mask_rate, self.mask_span)
        c_nlc = self.transform(z_nlc, mask)                       # (N, L+1, C)
        negatives, neg_inds = self.sample_negatives(z_nlc, neg_key)
        logits = self.compute_logits(z_nlc, c_nlc, negatives, neg_inds)  # (N*L, K+1)
        unmasked_z = z_nlc.transpose(0, 2, 1)                     # (N, C, L)   module layout
        c = c_nlc.transpose(0, 2, 1)                              # (N, C, L+1) module layout
        return logits, unmasked_z, mask, c


# TODO(synk): DataParallel / encoder backward-hook gradient scaling are training-time
# concerns with no forward-pass Pallas equivalent; omitted.

if __name__ == "__main__":
    key = jax.random.PRNGKey(0)
    N, C_in, T = 2, 4, 32      # L = T // 2 = 16 encoded tokens
    hidden = 32
    num_negatives = 4

    k_x, k_params, k_neg = jax.random.split(key, 3)
    x = jax.random.normal(k_x, (N, C_in, T), jnp.float32)

    model = ContrastiveSSLPallas(
        in_channels=C_in, hidden=hidden,
        mask_rate=0.1, mask_span=6, temp=0.5,
        num_negatives=num_negatives, key=k_params,
    )

    logits, unmasked_z, mask, c = model.forward(x, k_neg)
    jax.block_until_ready((logits, unmasked_z, mask, c))

    L = T // 2
    assert logits.shape == (N * L, num_negatives + 1)
    assert unmasked_z.shape == (N, hidden, L)
    assert mask.shape == (N, L)
    assert c.shape == (N, hidden, L + 1)
    assert bool(jnp.all(jnp.isfinite(unmasked_z)))
    assert bool(jnp.all(jnp.isfinite(logits)))   # sampling excludes the positive position
    print("KERNEL_OK")
</pallas_src>

<mosaic_0001>
module attributes {stable_mosaic.version = 11 : i64} {
  func.func @_matmul_bias_act_kernel(%arg0: i32, %arg1: memref<8x128xbf16, #tpu.memory_space<vmem>>, %arg2: memref<128x32xbf16, #tpu.memory_space<vmem>>, %arg3: memref<1x32xf32, #tpu.memory_space<vmem>>, %arg4: memref<8x32xf32, #tpu.memory_space<vmem>>) attributes {dimension_semantics = [#tpu.dimension_semantics<parallel>], iteration_bounds = array<i64: 4>, scalar_prefetch = 0 : i64, scratch_operands = 0 : i64, tpu.core_type = #tpu.core_type<tc>, window_params = [{transform_indices = @transform_0, window_bounds = array<i64: 8, 128>}, {pipeline_mode = #tpu.pipeline_mode<synchronous>, transform_indices = @transform_1, window_bounds = array<i64: 128, 32>}, {pipeline_mode = #tpu.pipeline_mode<synchronous>, transform_indices = @transform_2, window_bounds = array<i64: 1, 32>}, {transform_indices = @transform_3, window_bounds = array<i64: 8, 32>}]} {
    %c0 = arith.constant 0 : index
    %c0_0 = arith.constant 0 : index
    %0 = vector.load %arg1[%c0, %c0_0] : memref<8x128xbf16, #tpu.memory_space<vmem>>, vector<8x128xbf16>
    %c0_1 = arith.constant 0 : index
    %c0_2 = arith.constant 0 : index
    %1 = vector.load %arg2[%c0_1, %c0_2] : memref<128x32xbf16, #tpu.memory_space<vmem>>, vector<128x32xbf16>
    %cst = arith.constant dense<0.000000e+00> : vector<8x32xf32>
    %2 = tpu.matmul %0, %1, %cst {dimension_numbers = #tpu.dot_dimension_numbers<[1], [0], [0], [1], [0, 0, 1, 1], [], []>} : vector<8x128xbf16>, vector<128x32xbf16>, vector<8x32xf32> -> vector<8x32xf32>
    %c0_3 = arith.constant 0 : index
    %c0_4 = arith.constant 0 : index
    %3 = vector.load %arg3[%c0_3, %c0_4] : memref<1x32xf32, #tpu.memory_space<vmem>>, vector<1x32xf32>
    %4 = vector.broadcast %3 : vector<1x32xf32> to vector<8x32xf32>
    %5 = arith.addf %2, %4 : vector<8x32xf32>
    %6 = arith.mulf %5, %5 : vector<8x32xf32>
    %7 = arith.mulf %5, %6 : vector<8x32xf32>
    %cst_5 = arith.constant 4.471500e-02 : f32
    %8 = vector.broadcast %cst_5 : f32 to vector<8x32xf32>
    %9 = arith.mulf %8, %7 : vector<8x32xf32>
    %10 = arith.addf %5, %9 : vector<8x32xf32>
    %cst_6 = arith.constant 0.797884583 : f32
    %11 = vector.broadcast %cst_6 : f32 to vector<8x32xf32>
    %12 = arith.mulf %11, %10 : vector<8x32xf32>
    %13 = math.tanh %12 : vector<8x32xf32>
    %cst_7 = arith.constant 1.000000e+00 : f32
    %14 = vector.broadcast %cst_7 : f32 to vector<8x32xf32>
    %15 = arith.addf %14, %13 : vector<8x32xf32>
    %cst_8 = arith.constant 5.000000e-01 : f32
    %16 = vector.broadcast %cst_8 : f32 to vector<8x32xf32>
    %17 = arith.mulf %16, %15 : vector<8x32xf32>
    %18 = arith.mulf %5, %17 : vector<8x32xf32>
    %c0_9 = arith.constant 0 : index
    %c0_10 = arith.constant 0 : index
    %19 = vector.load %arg4[%c0_9, %c0_10] : memref<8x32xf32, #tpu.memory_space<vmem>>, vector<8x32xf32>
    tpu.vector_store %arg4[%c0_9, %c0_10], %18 {strides = array<i32>} : memref<8x32xf32, #tpu.memory_space<vmem>>, vector<8x32xf32>,
    return
  }
  func.func @transform_0(%arg0: i32) -> (i32, i32) {
    %c0_i32 = arith.constant 0 : i32
    %c0_i32_0 = arith.constant 0 : i32
    return %arg0, %c0_i32 : i32, i32
  }
  func.func @transform_1(%arg0: i32) -> (i32, i32) {
    %c0_i32 = arith.constant 0 : i32
    %c0_i32_0 = arith.constant 0 : i32
    %c0_i32_1 = arith.constant 0 : i32
    return %c0_i32, %c0_i32_0 : i32, i32
  }
  func.func @transform_2(%arg0: i32) -> (i32, i32) {
    %c0_i32 = arith.constant 0 : i32
    %c0_i32_0 = arith.constant 0 : i32
    %c0_i32_1 = arith.constant 0 : i32
    return %c0_i32, %c0_i32_0 : i32, i32
  }
  func.func @transform_3(%arg0: i32) -> (i32, i32) {
    %c0_i32 = arith.constant 0 : i32
    %c0_i32_0 = arith.constant 0 : i32
    return %arg0, %c0_i32 : i32, i32
  }
}

</mosaic_0001>

<llo_original>
// kernel: tpu_custom_call.1
$region0: #{tpu_custom_call.1}
  #allocation0 [shape = 'u32[]', space=smem, size = 0x4, offset = 0x4, fixed_abs, tag = 'smem constant byte address 0x4 - core index']
  #allocation1 [shape = 'u32[144,128]{1,0:T(1,128)}', space=vmem, size = 0x12000, scoped, tag = 'internal scratch']
  %s0 = inlined_call_operand.vmem [shape: bf16[32,128], index: 0, kind: input, shape index: {}]
  %s1 = inlined_call_operand.vmem [shape: bf16[128,32], index: 1, kind: input, shape index: {}]
  %s2 = inlined_call_operand.vmem [shape: f32[1,32], index: 2, kind: input, shape index: {}]
  %s3 = inlined_call_operand.hbm [shape: f32[32,32], index: 3, kind: output, shape index: {}]
  %s4 = sld [smem:[#allocation0]]
  $region45: #{tpu_custom_call.1} parent=0
    _
  %s6 = ssub.s32 1, %s4
  %s7 = scalar_select 0, %s6, %s4
  $region1: #{tpu_custom_call.1} parent=0
    #allocation2 [shape = 'u8[8192]{0}', space=vmem, size = 0x2000, scoped, tag = 'output window, operand 0']
    #allocation3 [shape = 's32[2]{0}', space=sflag, size = 0x8, scoped, tag = 'scoped memory for tpu_custom_call.1']
    %8 = vsyncpa [#allocation3], 0
    %s9 = scalar_lea.sflag [#allocation3], 1
    %10 = vsyncpa %s9, 0
    loop: start=0, step=1, limit=6
    $region2: #{tpu_custom_call.1} parent=1 // loop_pre_header
      _
    $region3: #{tpu_custom_call.1} parent=1 // loop_header
      %s12 = sphi 0, %s16
      %p13 = scmp.ge.s32.totalorder %s12, 6
      %s22 = sphi 0, %s24
      %s25 = sphi 0, %s22
      %s26 = sphi 0, %s25
      %s42 = sphi 0, %s26
      %s46 = sphi 0, %s46
      %s48 = sphi 0, %s46
      %s49 = sphi 0, %s48
      %s63 = sphi 0, %s49
      %s67 = sphi 0, %s67
      %s69 = sphi 0, %s67
      %s70 = sphi 0, %s69
      %s84 = sphi 0, %s70
      %s90 = sphi 0, %s92
      %s93 = sphi 0, %s90
      %s94 = sphi 0, %s93
      %s110 = sphi 0, %s94
    $region4: #{tpu_custom_call.1} parent=1 // loop_header_branch
      %15 = sbr.rel (%p13) target = $region8
    $region5: #{tpu_custom_call.1} parent=1 // loop_body
      %s17 = ssub.s32 %s12, 1
      %s18 = ssub.s32 %s12, 2
      %s19 = sadd.s32 %s12, 1
      %s20 = ssub.s32 %s12, %s19
      %p21 = scmp.eq.s32.totalorder %s20, 0
      %s23 = sadd.s32 %s22, 1
      %s24 = scalar_select %p21, %s22, %s23
      %p27 = pneg %p21
      %p28 = scmp.eq.s32.totalorder %s12, 3
      %p29 = por %p27, %p28
      %p30 = scmp.ne.s32.totalorder %s22, %s25
      %p31 = scmp.eq.s32.totalorder %s12, 0
      %p32 = por %p30, %p31
      %p33 = scmp.ne.s32.totalorder %s22, %s25
      %p34 = scmp.eq.s32.totalorder %s17, 3
      %p35 = por %p33, %p34
      %p36 = scmp.ne.s32.totalorder %s25, %s26
      %p37 = scmp.eq.s32.totalorder %s17, 0
      %p38 = por %p36, %p37
      %p39 = scmp.ne.s32.totalorder %s25, %s26
      %p40 = scmp.eq.s32.totalorder %s18, 3
      %p41 = por %p39, %p40
      %p43 = scmp.ne.s32.totalorder %s26, %s42
      %p44 = scmp.eq.s32.totalorder %s18, 0
      %p45 = por %p43, %p44
      %s47 = sadd.s32 %s46, 1
      %p50 = scmp.eq.s32.totalorder %s12, 3
      %p51 = scmp.ne.s32.totalorder %s46, %s48
      %p52 = scmp.eq.s32.totalorder %s12, 0
      %p53 = por %p51, %p52
      %p54 = scmp.ne.s32.totalorder %s46, %s48
      %p55 = scmp.eq.s32.totalorder %s17, 3
      %p56 = por %p54, %p55
      %p57 = scmp.ne.s32.totalorder %s48, %s49
      %p58 = scmp.eq.s32.totalorder %s17, 0
      %p59 = por %p57, %p58
      %p60 = scmp.ne.s32.totalorder %s48, %s49
      %p61 = scmp.eq.s32.totalorder %s18, 3
      %p62 = por %p60, %p61
      %p64 = scmp.ne.s32.totalorder %s49, %s63
      %p65 = scmp.eq.s32.totalorder %s18, 0
      %p66 = por %p64, %p65
      %s68 = sadd.s32 %s67, 1
      %p71 = scmp.eq.s32.totalorder %s12, 3
      %p72 = scmp.ne.s32.totalorder %s67, %s69
      %p73 = scmp.eq.s32.totalorder %s12, 0
      %p74 = por %p72, %p73
      %p75 = scmp.ne.s32.totalorder %s67, %s69
      %p76 = scmp.eq.s32.totalorder %s17, 3
      %p77 = por %p75, %p76
      %p78 = scmp.ne.s32.totalorder %s69, %s70
      %p79 = scmp.eq.s32.totalorder %s17, 0
      %p80 = por %p78, %p79
      %p81 = scmp.ne.s32.totalorder %s69, %s70
      %p82 = scmp.eq.s32.totalorder %s18, 3
      %p83 = por %p81, %p82
      %p85 = scmp.ne.s32.totalorder %s70, %s84
      %p86 = scmp.eq.s32.totalorder %s18, 0
      %p87 = por %p85, %p86
      %s88 = ssub.s32 %s12, %s19
      %p89 = scmp.eq.s32.totalorder %s88, 0
      %s91 = sadd.s32 %s90, 1
      %s92 = scalar_select %p89, %s90, %s91
      %p95 = pneg %p89
      %p96 = scmp.eq.s32.totalorder %s12, 3
      %p97 = por %p95, %p96
      %p98 = scmp.ne.s32.totalorder %s90, %s93
      %p99 = scmp.eq.s32.totalorder %s12, 0
      %p100 = por %p98, %p99
      %p101 = scmp.ne.s32.totalorder %s90, %s93
      %p102 = scmp.eq.s32.totalorder %s17, 3
      %p103 = por %p101, %p102
      %p104 = scmp.ne.s32.totalorder %s93, %s94
      %p105 = scmp.eq.s32.totalorder %s17, 0
      %p106 = por %p104, %p105
      %p107 = scmp.ne.s32.totalorder %s93, %s94
      %p108 = scmp.eq.s32.totalorder %s18, 3
      %p109 = por %p107, %p108
      %p111 = scmp.ne.s32.totalorder %s94, %s110
      %p112 = scmp.eq.s32.totalorder %s18, 0
      %p113 = por %p111, %p112
      %p114 = scmp.le.s32.totalorder 1, %s12
      %p115 = scmp.lt.s32.totalorder %s12, 5
      %p116 = pnand %p114, %p115
      %p117 = pneg %p116
      // Predicated region
      $region9: #{tpu_custom_call.1} parent=5 // pred_check
        _
      $region10: #{tpu_custom_call.1} parent=5 // pred_check_branch
        %119 = sbr.rel (%p116) target = $region12
      $region11: #{tpu_custom_call.1} parent=5 // pred_region
        %s120 = ssub.s32 %s12, 1
        // Predicated region
        $region13: #{tpu_custom_call.1} parent=11 // pred_check
          %p121 = pneg %p59
        $region14: #{tpu_custom_call.1} parent=11 // pred_check_branch
          %123 = sbr.rel (%p121) target = $region16
        $region15: #{tpu_custom_call.1} parent=11 // pred_region
          _
        $region16: #{tpu_custom_call.1} parent=11 // pred_fallthru
          _
        // Predicated region
        $region17: #{tpu_custom_call.1} parent=11 // pred_check
          %p124 = pneg %p80
        $region18: #{tpu_custom_call.1} parent=11 // pred_check_branch
          %126 = sbr.rel (%p124) target = $region20
        $region19: #{tpu_custom_call.1} parent=11 // pred_region
          _
        $region20: #{tpu_custom_call.1} parent=11 // pred_fallthru
          _
      $region12: #{tpu_custom_call.1} parent=5 // pred_fallthru
        _
      %p127 = scmp.lt.s32.totalorder %s12, 4
      // Predicated region
      $region21: #{tpu_custom_call.1} parent=5 // pred_check
        %p128 = pneg %p127
      $region22: #{tpu_custom_call.1} parent=5 // pred_check_branch
        %130 = sbr.rel (%p128) target = $region24
      $region23: #{tpu_custom_call.1} parent=5 // pred_region
        // Predicated region
        $region25: #{tpu_custom_call.1} parent=23 // pred_check
          %p131 = pneg %p32
        $region26: #{tpu_custom_call.1} parent=23 // pred_check_branch
          %133 = sbr.rel (%p131) target = $region28
        $region27: #{tpu_custom_call.1} parent=23 // pred_region
          %p134 = scmp.lt.s32.totalorder %s12, 3
          %s135 = scalar_select %p134, %s12, 3
          %s136 = smul.addr %s135, 4
          %s137 = scalar_lea.vmem %s0, %s136
        $region28: #{tpu_custom_call.1} parent=23 // pred_fallthru
          _
      $region24: #{tpu_custom_call.1} parent=5 // pred_fallthru
        _
      %p138 = scmp.le.s32.totalorder 1, %s12
      %p139 = scmp.lt.s32.totalorder %s12, 5
      %p140 = pnand %p138, %p139
      %p141 = pneg %p140
      // Predicated region
      $region29: #{tpu_custom_call.1} parent=5 // pred_check
        _
      $region30: #{tpu_custom_call.1} parent=5 // pred_check_branch
        %143 = sbr.rel (%p140) target = $region32
      $region31: #{tpu_custom_call.1} parent=5 // pred_region
        %s144 = ssub.s32 %s12, 1
        %p145 = scmp.lt.s32.totalorder %s17, 3
        %s146 = scalar_select %p145, %s17, 3
        %s147 = smul.addr %s146, 4
        %s148 = scalar_lea.vmem %s0, %s147
        %p149 = pneg %p38
        %p150 = pneg %p35
        %p151 = pneg %p59
        %p152 = pneg %p56
        %p153 = pneg %p80
        %p154 = pneg %p77
        %p155 = pneg %p106
        %p156 = pneg %p103
        %s157 = sand.u32 %s93, 1
        %s158 = scalar_lea.sflag [#allocation3], %s157
        %s159 = sand.u32 %s93, 1
        %s160 = smul.addr %s159, 8
        %s161 = scalar_lea.vmem [#allocation2], %s160
        %p162 = scmp.lt.s32.totalorder %s17, 3
        %s163 = scalar_select %p162, %s17, 3
        %s164 = smul.addr %s163, 4
        %s165 = scalar_lea.vmem %s0, %s164
        %v167 = vld [vmem:[%s165] sm:$0xf]
        %v168 = vld [vmem:[%s1] sm:$0xf]
        %v169 = vld [vmem:[%s1 + $0x4] sm:$0xf]
        %v170 = vld [vmem:[%s1 + $0x8] sm:$0xf]
        %v171 = vld [vmem:[%s1 + $0xc] sm:$0xf]
        %v172 = vld [vmem:[%s1 + $0x10] sm:$0xf]
        %v173 = vld [vmem:[%s1 + $0x14] sm:$0xf]
        %v174 = vld [vmem:[%s1 + $0x18] sm:$0xf]
        %v175 = vld [vmem:[%s1 + $0x1c] sm:$0xf]
        %v176 = vld [vmem:[%s1 + $0x20] sm:$0xf]
        %v177 = vld [vmem:[%s1 + $0x24] sm:$0xf]
        %v178 = vld [vmem:[%s1 + $0x28] sm:$0xf]
        %v179 = vld [vmem:[%s1 + $0x2c] sm:$0xf]
        %v180 = vld [vmem:[%s1 + $0x30] sm:$0xf]
        %v181 = vld [vmem:[%s1 + $0x34] sm:$0xf]
        %v182 = vld [vmem:[%s1 + $0x38] sm:$0xf]
        %v183 = vld [vmem:[%s1 + $0x3c] sm:$0xf]
        %v184 = vld [vmem:[%s2] sm:$0x1]
        %v186 = vlaneseq
        %v187 = vshrl.u32 %v186, 7
        %v188 = vsub.s32 0, %v187
        %v189 = vrot.slane %v184, %v188
        %v207 = vunpack.c.l.b16 %v168
        %v208 = vunpack.c.l.b16 %v169
        %v209 = vunpack.c.l.b16 %v170
        %v210 = vunpack.c.l.b16 %v171
        %v211 = vunpack.c.l.b16 %v172
        %v212 = vunpack.c.l.b16 %v173
        %v213 = vunpack.c.l.b16 %v174
        %v214 = vunpack.c.l.b16 %v175
        %v215 = vunpack.c.l.b16 %v176
        %v216 = vunpack.c.l.b16 %v177
        %v217 = vunpack.c.l.b16 %v178
        %v218 = vunpack.c.l.b16 %v179
        %v219 = vunpack.c.l.b16 %v180
        %v220 = vunpack.c.l.b16 %v181
        %v221 = vunpack.c.l.b16 %v182
        %v222 = vunpack.c.l.b16 %v183
        %v223 = vpack.c.b16 %v208, %v207
        %v224 = vpack.c.b16 %v210, %v209
        %v225 = vpack.c.b16 %v212, %v211
        %v226 = vpack.c.b16 %v214, %v213
        %v227 = vpack.c.b16 %v216, %v215
        %v228 = vpack.c.b16 %v218, %v217
        %v229 = vpack.c.b16 %v220, %v219
        %v230 = vpack.c.b16 %v222, %v221
        %239 = vmatprep.subr.bf16.mxu0 0
        %240 = vmatpush1.bf16.msra.mxu0 %v230
        %241 = vmatprep.subr.bf16.mxu0 0
        %242 = vmatpush1.bf16.msra.mxu0 %v229
        %243 = vmatprep.subr.bf16.mxu0 0
        %244 = vmatpush1.bf16.msra.mxu0 %v228
        %245 = vmatprep.subr.bf16.mxu0 0
        %246 = vmatpush1.bf16.msra.mxu0 %v227
        %247 = vmatprep.subr.bf16.mxu0 0
        %248 = vmatpush1.bf16.msra.mxu0 %v226
        %249 = vmatprep.subr.bf16.mxu0 0
        %250 = vmatpush1.bf16.msra.mxu0 %v225
        %251 = vmatprep.subr.bf16.mxu0 0
        %252 = vmatpush1.bf16.msra.mxu0 %v224
        %253 = vmatprep.subr.bf16.mxu0 0
        %254 = vmatpush1.bf16.msra.mxu0 %v223
        %255 = vmatprep.subr.bf16.mxu0 0
        %256 = vmatpush2.bf16.msra.mxu0 0
        %257 = vmatprep.subr.bf16.mxu0 0
        %258 = vmatpush2.bf16.msra.mxu0 0
        %259 = vmatprep.subr.bf16.mxu0 0
        %260 = vmatpush2.bf16.msra.mxu0 0
        %261 = vmatprep.subr.bf16.mxu0 0
        %262 = vmatpush2.bf16.msra.mxu0 0
        %263 = vmatprep.subr.bf16.mxu0 0
        %264 = vmatpush2.bf16.msra.mxu0 0
        %265 = vmatprep.subr.bf16.mxu0 0
        %266 = vmatpush2.bf16.msra.mxu0 0
        %267 = vmatprep.subr.bf16.mxu0 0
        %268 = vmatpush2.bf16.msra.mxu0 0
        %269 = vmatprep.subr.bf16.mxu0 0
        %270 = vmatpush2.bf16.msra.mxu0 0
        %271 = vmatprep.mubr.bf16.mxu0 0
        %272 = vmatmul.mubr.bf16.gmra.mxu0 %v167
        %v273 = vpop.f32.mrf.mxu0
        %v274 = vadd.f32 %v189, %v273
        %v275 = vpop.f32.mrf.mxu0
        %v276 = vpop.f32.mrf.mxu0
        %v277 = vpop.f32.mrf.mxu0
        %278 = vdwg.mxu0
        %v279 = vmul.f32 %v274, %v274
        %v280 = vmul.f32 %v274, %v279
        %v281 = vmul.f32 %v280, 0.044715
        %v282 = vadd.f32 %v274, %v281
        %v283 = vmul.f32 %v282, 0.7978846
        %v284 = vtanh.pop %v283
        %v285 = vadd.f32 %v284, 1.0
        %v286 = vmul.f32 %v285, 0.5
        %v287 = vmul.f32 %v274, %v286
        %vm288 = vcmask 261120
        %289 = vst.msk [vmem:[%s161] sm:$0xff] %vm288, %v287
        %s290 = sand.u32 %s93, 1
        %s291 = scalar_lea.sflag [#allocation3], %s290
        %s292 = sand.u32 %s93, 1
        %s293 = smul.addr %s292, 8
        %s294 = scalar_lea.vmem [#allocation2], %s293
        // Predicated region
        $region33: #{tpu_custom_call.1} parent=31 // pred_check
          %p295 = pneg %p103
        $region34: #{tpu_custom_call.1} parent=31 // pred_check_branch
          %297 = sbr.rel (%p295) target = $region36
        $region35: #{tpu_custom_call.1} parent=31 // pred_region
          %s299 = ssub.s32 128, 128
          %300 = vsyncadd %s291, %s299
          %s301 = smul.addr %s17, 128
          %s302 = scalar_lea.hbm %s3, %s301
          %s304 = sshll.u32 %s294, 4
          %s305 = int_to_ptr.vmem [resolvable:$true] %s304
          %307 = dma.vmem_to_hbm [thread:$0]  %s305, 128, %s302, %s291
        $region36: #{tpu_custom_call.1} parent=31 // pred_fallthru
          _
      $region32: #{tpu_custom_call.1} parent=5 // pred_fallthru
        _
      %p308 = scmp.le.s32.totalorder 2, %s12
      // Predicated region
      $region37: #{tpu_custom_call.1} parent=5 // pred_check
        %p309 = pneg %p308
      $region38: #{tpu_custom_call.1} parent=5 // pred_check_branch
        %311 = sbr.rel (%p309) target = $region40
      $region39: #{tpu_custom_call.1} parent=5 // pred_region
        %s312 = ssub.s32 %s12, 2
        // Predicated region
        $region41: #{tpu_custom_call.1} parent=39 // pred_check
          %p313 = pneg %p109
        $region42: #{tpu_custom_call.1} parent=39 // pred_check_branch
          %315 = sbr.rel (%p313) target = $region44
        $region43: #{tpu_custom_call.1} parent=39 // pred_region
          %s316 = sand.u32 %s94, 1
          %s317 = scalar_lea.sflag [#allocation3], %s316
          %s318 = sand.u32 %s94, 1
          %s319 = smul.addr %s318, 8
          %s320 = scalar_lea.vmem [#allocation2], %s319
          %321 = dma.done %s317, 128
        $region44: #{tpu_custom_call.1} parent=39 // pred_fallthru
          _
      $region40: #{tpu_custom_call.1} parent=5 // pred_fallthru
        _
    $region6: #{tpu_custom_call.1} parent=1 // loop_footer
      %s16 = sadd.s32 1, %s12
    $region7: #{tpu_custom_call.1} parent=1 // loop_footer_branch
      %11 = sbr.rel target = $region3
    $region8: #{tpu_custom_call.1} parent=1 // loop_exit
      _
    %322 = vsyncpa [#allocation3], 1
    %s323 = scalar_lea.sflag [#allocation3], 1
    %324 = vsyncpa %s323, 1

</llo_original>
